<compile_context>
chip_gen: v6e
topology: v6e:2x2x1
jax: 0.10.0
libtpu: 0.0.40
codegen_flags: <defaults>
</compile_context>

<pallas_src>
import functools

import jax
import jax.numpy as jnp
from jax.experimental import pallas as pl
from jax.experimental.pallas import tpu as pltpu

_LANE = 128
_SUBLANE = 8
_MAX_BLOCK_ROWS = 4096   # (4096, 128) f32 block = 2 MiB per input per buffer
_NUM_PARTIALS = 2        # leading "parallel" grid axis (v7x has 2 TensorCores)


def _l1_sum_kernel(a_ref, b_ref, out_ref, acc_ref, *,
                   inner_steps, block_rows, valid_rows, needs_mask):
    """Accumulate sum(|a - b|) over the inner ("arbitrary") grid axis."""
    i = pl.program_id(0)   # parallel partial-sum axis
    j = pl.program_id(1)   # sequential reduction axis

    @pl.when(j == 0)
    def _():
        acc_ref[...] = jnp.zeros_like(acc_ref)

    a = a_ref[...].astype(jnp.float32)
    b = b_ref[...].astype(jnp.float32)
    contrib = jnp.abs(a - b)

    if needs_mask:
        # Zero rows that fall past the end of the (un-padded) input.
        row0 = (i * inner_steps + j) * block_rows
        rows = row0 + jax.lax.broadcasted_iota(jnp.int32, contrib.shape, 0)
        contrib = jnp.where(rows < valid_rows, contrib, jnp.float32(0.0))

    # Elementwise VPU accumulation into a vreg-shaped running sum; only the
    # non-vreg leading axis is reduced per step (no XLU / no scalar RMW).
    acc_ref[...] += jnp.sum(
        contrib.reshape(block_rows // _SUBLANE, _SUBLANE, _LANE), axis=0)

    @pl.when(j == pl.num_programs(1) - 1)
    def _():
        # Single cross-lane/sublane reduce per partial, once per call.
        out_ref[0, 0] = jnp.sum(acc_ref[...])


def _l1_abs_sum_2d(a2d, b2d, block_rows):
    """Sum of |a - b| over a (rows, 128) pair of arrays via one pallas_call."""
    valid_rows = a2d.shape[0]
    total_blocks = -(-valid_rows // block_rows)
    num_partials = _NUM_PARTIALS if total_blocks >= _NUM_PARTIALS else 1
    inner_steps = -(-total_blocks // num_partials)
    # Masking needed whenever the grid covers more rows than actually exist.
    needs_mask = (num_partials * inner_steps * block_rows) != valid_rows
    grid_overshoots = (num_partials * inner_steps) != total_blocks

    def in_map(i, j):
        blk = i * inner_steps + j
        if grid_overshoots:
            # Keep block starts in-bounds for fully-masked overshoot steps.
            blk = jnp.minimum(blk, total_blocks - 1)
        return (blk, 0)

    kernel = functools.partial(
        _l1_sum_kernel,
        inner_steps=inner_steps,
        block_rows=block_rows,
        valid_rows=valid_rows,
        needs_mask=needs_mask,
    )

    itemsize = jnp.dtype(a2d.dtype).itemsize
    n_elems = valid_rows * _LANE
    cost = pl.CostEstimate(
        flops=2 * n_elems,
        transcendentals=0,
        bytes_accessed=2 * n_elems * itemsize + num_partials * 4,
    )

    partials = pl.pallas_call(
        kernel,
        out_shape=jax.ShapeDtypeStruct((num_partials, 1), jnp.float32),
        grid_spec=pltpu.PrefetchScalarGridSpec(
            num_scalar_prefetch=0,
            grid=(num_partials, inner_steps),
            in_specs=[
                pl.BlockSpec((block_rows, _LANE), in_map),
                pl.BlockSpec((block_rows, _LANE), in_map),
            ],
            out_specs=pl.BlockSpec(
                (1, 1), lambda i, j: (i, 0), memory_space=pltpu.SMEM
            ),
            scratch_shapes=[pltpu.VMEM((_SUBLANE, _LANE), jnp.float32)],
        ),
        compiler_params=pltpu.CompilerParams(
            dimension_semantics=("parallel", "arbitrary"),
            vmem_limit_bytes=32 * 1024 * 1024,
        ),
        cost_estimate=cost,
    )(a2d, b2d)
    return jnp.sum(partials)


def l1_loss_pair(a, b, lam=1.0):
    """mean(|a - b|) * lam, matching nn.L1Loss(reduction='mean')."""
    assert a.shape == b.shape, "L1Loss requires matching shapes"
    n = int(a.size)
    flat_a = a.reshape(-1)
    flat_b = b.reshape(-1)

    # Sub-32-bit dtypes pack along sublanes -> 16-row granularity.
    row_mult = _SUBLANE if jnp.dtype(a.dtype).itemsize >= 4 else 16
    rows_total = n // _LANE
    kernel_rows = (rows_total // row_mult) * row_mult
    kernel_elems = kernel_rows * _LANE

    total = jnp.float32(0.0)
    if kernel_rows > 0:
        a2d = flat_a[:kernel_elems].reshape(kernel_rows, _LANE)
        b2d = flat_b[:kernel_elems].reshape(kernel_rows, _LANE)
        block_rows = min(_MAX_BLOCK_ROWS, kernel_rows)
        total = total + _l1_abs_sum_2d(a2d, b2d, block_rows)
    if kernel_elems < n:
        # Tiny ragged remainder (< row_mult*128 + 128 elements): plain JAX.
        ta = flat_a[kernel_elems:].astype(jnp.float32)
        tb = flat_b[kernel_elems:].astype(jnp.float32)
        total = total + jnp.sum(jnp.abs(ta - tb))

    return (total / jnp.float32(n)) * jnp.float32(lam)


def l1_loss(input1, input2, lam=1.0):
    """Forward of the PyTorch L1Loss module: sum of per-pair mean L1 * lam."""
    in1 = input1 if isinstance(input1, (list, tuple)) else [input1]
    in2 = input2 if isinstance(input2, (list, tuple)) else [input2]
    loss = jnp.float32(0.0)
    # TODO(synk): many tiny same-dtype pairs could be fused into a single
    # pallas_call to amortize launch overhead; kept per-pair for generality.
    for a, b in zip(in1, in2):
        loss = loss + l1_loss_pair(a, b, lam)
    return loss


if __name__ == "__main__":
    key = jax.random.PRNGKey(0)
    k1, k2, k3, k4 = jax.random.split(key, 4)

    # NCHW inputs, small shapes
    x1 = jax.random.normal(k1, (2, 4, 16, 16), dtype=jnp.float32)
    y1 = jax.random.normal(k2, (2, 4, 16, 16), dtype=jnp.float32)
    # second pair (exercise the list path)
    x2 = jax.random.normal(k3, (2, 4, 8, 8), dtype=jnp.float32)
    y2 = jax.random.normal(k4, (2, 4, 8, 8), dtype=jnp.float32)

    # single-tensor call
    loss_single = jax.block_until_ready(l1_loss(x1, y1, lam=1.0))
    # list call
    loss_list = jax.block_until_ready(l1_loss([x1, x2], [y1, y2], lam=1.0))

    # reference check in plain JAX
    ref_single = jnp.mean(jnp.abs(x1 - y1))
    ref_list = ref_single + jnp.mean(jnp.abs(x2 - y2))
    assert jnp.allclose(loss_single, ref_single, rtol=1e-5, atol=1e-5)
    assert jnp.allclose(loss_list, ref_list, rtol=1e-5, atol=1e-5)

    print("KERNEL_OK")
</pallas_src>

<mosaic_0001>
module attributes {stable_mosaic.version = 11 : i64} {
  func.func @_l1_sum_kernel(%arg0: i32, %arg1: i32, %arg2: memref<16x128xf32, #tpu.memory_space<vmem>>, %arg3: memref<16x128xf32, #tpu.memory_space<vmem>>, %arg4: memref<1x1xf32, #tpu.memory_space<smem>>, %arg5: memref<8x128xf32, #tpu.memory_space<vmem>>) attributes {dimension_semantics = [#tpu.dimension_semantics<parallel>, #tpu.dimension_semantics<arbitrary>], iteration_bounds = array<i64: 1, 1>, scalar_prefetch = 0 : i64, scratch_operands = 1 : i64, tpu.core_type = #tpu.core_type<tc>, window_params = [{transform_indices = @transform_0, window_bounds = array<i64: 16, 128>}, {transform_indices = @transform_1, window_bounds = array<i64: 16, 128>}, {transform_indices = @transform_2, window_bounds = array<i64: 1, 1>}]} {
    %c0_i32 = arith.constant 0 : i32
    %0 = arith.cmpi eq, %arg1, %c0_i32 : i32
    %1 = arith.extui %0 : i1 to i32
    %c0_i32_0 = arith.constant 0 : i32
    %2 = arith.cmpi ne, %1, %c0_i32_0 : i32
    scf.if %2 {
      %cst_10 = arith.constant 0.000000e+00 : f32
      %15 = vector.broadcast %cst_10 : f32 to vector<8x128xf32>
      %c0_11 = arith.constant 0 : index
      %c0_12 = arith.constant 0 : index
      %16 = vector.load %arg5[%c0_11, %c0_12] : memref<8x128xf32, #tpu.memory_space<vmem>>, vector<8x128xf32>
      tpu.vector_store %arg5[%c0_11, %c0_12], %15 {strides = array<i32>} : memref<8x128xf32, #tpu.memory_space<vmem>>, vector<8x128xf32>,
    } else {
    }
    %c0 = arith.constant 0 : index
    %c0_1 = arith.constant 0 : index
    %3 = vector.load %arg2[%c0, %c0_1] : memref<16x128xf32, #tpu.memory_space<vmem>>, vector<16x128xf32>
    %c0_2 = arith.constant 0 : index
    %c0_3 = arith.constant 0 : index
    %4 = vector.load %arg3[%c0_2, %c0_3] : memref<16x128xf32, #tpu.memory_space<vmem>>, vector<16x128xf32>
    %5 = arith.subf %3, %4 : vector<16x128xf32>
    %6 = math.absf %5 : vector<16x128xf32>
    %c0_4 = arith.constant 0 : index
    %c0_5 = arith.constant 0 : index
    %7 = vector.load %arg5[%c0_4, %c0_5] : memref<8x128xf32, #tpu.memory_space<vmem>>, vector<8x128xf32>
    %8 = vector.shape_cast %6 : vector<16x128xf32> to vector<2x8x128xf32>
    %cst = arith.constant dense<0.000000e+00> : vector<8x128xf32>
    %9 = vector.multi_reduction <add>, %8, %cst [0] : vector<2x8x128xf32> to vector<8x128xf32>
    %10 = arith.addf %7, %9 : vector<8x128xf32>
    %c0_6 = arith.constant 0 : index
    %c0_7 = arith.constant 0 : index
    %11 = vector.load %arg5[%c0_6, %c0_7] : memref<8x128xf32, #tpu.memory_space<vmem>>, vector<8x128xf32>
    tpu.vector_store %arg5[%c0_6, %c0_7], %10 {strides = array<i32>} : memref<8x128xf32, #tpu.memory_space<vmem>>, vector<8x128xf32>,
    %c0_i32_8 = arith.constant 0 : i32
    %12 = arith.cmpi eq, %arg1, %c0_i32_8 : i32
    %13 = arith.extui %12 : i1 to i32
    %c0_i32_9 = arith.constant 0 : i32
    %14 = arith.cmpi ne, %13, %c0_i32_9 : i32
    scf.if %14 {
      %c0_10 = arith.constant 0 : index
      %c0_11 = arith.constant 0 : index
      %15 = vector.load %arg5[%c0_10, %c0_11] : memref<8x128xf32, #tpu.memory_space<vmem>>, vector<8x128xf32>
      %16 = vector.shape_cast %15 : vector<8x128xf32> to vector<1x8x128xf32>
      %cst_12 = arith.constant dense<0.000000e+00> : vector<1xf32>
      %17 = vector.multi_reduction <add>, %16, %cst_12 [1, 2] : vector<1x8x128xf32> to vector<1xf32>
      %18 = vector.shape_cast %17 : vector<1xf32> to vector<1x1x1xf32>
      %19 = vector.extract %18[0, 0, 0] : f32 from vector<1x1x1xf32>
      %c0_13 = arith.constant 0 : index
      %c0_14 = arith.constant 0 : index
      %20 = memref.load %arg4[%c0_13, %c0_14] : memref<1x1xf32, #tpu.memory_space<smem>>
      memref.store %19, %arg4[%c0_13, %c0_14] : memref<1x1xf32, #tpu.memory_space<smem>>
    } else {
    }
    return
  }
  func.func @transform_0(%arg0: i32, %arg1: i32) -> (i32, i32) {
    %c1_i32 = arith.constant 1 : i32
    %0 = arith.muli %arg0, %c1_i32 : i32
    %1 = arith.addi %0, %arg1 : i32
    %c0_i32 = arith.constant 0 : i32
    %c0_i32_0 = arith.constant 0 : i32
    return %1, %c0_i32 : i32, i32
  }
  func.func @transform_1(%arg0: i32, %arg1: i32) -> (i32, i32) {
    %c1_i32 = arith.constant 1 : i32
    %0 = arith.muli %arg0, %c1_i32 : i32
    %1 = arith.addi %0, %arg1 : i32
    %c0_i32 = arith.constant 0 : i32
    %c0_i32_0 = arith.constant 0 : i32
    return %1, %c0_i32 : i32, i32
  }
  func.func @transform_2(%arg0: i32, %arg1: i32) -> (i32, i32) {
    %c0_i32 = arith.constant 0 : i32
    %c0_i32_0 = arith.constant 0 : i32
    return %arg0, %c0_i32 : i32, i32
  }
}

</mosaic_0001>

<llo_original>
// kernel: tpu_custom_call.1
$region0: #{tpu_custom_call.1}
  #allocation0 [shape = 'u32[]', space=smem, size = 0x4, offset = 0x4, fixed_abs, tag = 'smem constant byte address 0x4 - core index']
  #allocation1 [shape = 'u32[144,128]{1,0:T(1,128)}', space=vmem, size = 0x12000, scoped, tag = 'internal scratch']
  #allocation2 [shape = 'f32[8,128]{1,0:T(8,128)}', space=vmem, size = 0x1000, scoped, tag = 'scratch operand']
  %s0 = inlined_call_operand.hbm [shape: f32[16,128], index: 0, kind: input, shape index: {}]
  %s1 = inlined_call_operand.hbm [shape: f32[16,128], index: 1, kind: input, shape index: {}]
  %s2 = inlined_call_operand.hbm [shape: f32[1,1], index: 2, kind: output, shape index: {}]
  %s3 = sld [smem:[#allocation0]]
  $region34: #{tpu_custom_call.1} parent=0
    _
  %s5 = ssub.s32 1, %s3
  %s6 = scalar_select 0, %s5, %s3
  $region1: #{tpu_custom_call.1} parent=0
    #allocation3 [shape = 'u8[8192]{0}', space=vmem, size = 0x2000, scoped, tag = 'input window, operand 0, single buffered']
    #allocation4 [shape = 's32[1]{0}', space=sflag, size = 0x4, scoped, tag = 'scoped memory for tpu_custom_call.1']
    #allocation5 [shape = 's32[1]{0}', space=sflag, size = 0x4, scoped, tag = 'scoped memory for tpu_custom_call.1']
    #allocation6 [shape = 'u8[8192]{0}', space=vmem, size = 0x2000, scoped, tag = 'input window, operand 1, single buffered']
    #allocation7 [shape = 's32[1]{0}', space=sflag, size = 0x4, scoped, tag = 'scoped memory for tpu_custom_call.1']
    #allocation8 [shape = 'u8[512]{0}', space=smem, size = 0x200, scoped, tag = 'output window, operand 0, single buffered']
    %7 = vsyncpa [#allocation4], 0
    %8 = vsyncpa [#allocation7], 0
    %9 = vsyncpa [#allocation5], 0
    // Predicated region
    $region2: #{tpu_custom_call.1} parent=1 // pred_check
      _
    $region3: #{tpu_custom_call.1} parent=1 // pred_check_branch
      %11 = sbr.rel (0) target = $region5
    $region4: #{tpu_custom_call.1} parent=1 // pred_region
      %s12 = sadd.s32 0, 0
      %s13 = smul.u32 2, %s12
      %s15 = ssub.s32 256, 256
      %16 = vsyncadd [#allocation4], %s15
      %s17 = smul.addr %s13, 128
      %s18 = scalar_lea.hbm %s0, %s17
      %s19 = sshll.u32 [#allocation3], 4
      %s20 = int_to_ptr.vmem [resolvable:$true] %s19
      %25 = dma.hbm_to_vmem [thread:$0]  %s18, 256, %s20, [#allocation4], 128, 128, 8
    $region5: #{tpu_custom_call.1} parent=1 // pred_fallthru
      _
    // Predicated region
    $region6: #{tpu_custom_call.1} parent=1 // pred_check
      _
    $region7: #{tpu_custom_call.1} parent=1 // pred_check_branch
      %27 = sbr.rel (0) target = $region9
    $region8: #{tpu_custom_call.1} parent=1 // pred_region
      %s28 = sadd.s32 0, 0
      %s29 = smul.u32 2, %s28
      %s31 = ssub.s32 256, 256
      %32 = vsyncadd [#allocation7], %s31
      %s33 = smul.addr %s29, 128
      %s34 = scalar_lea.hbm %s1, %s33
      %s35 = sshll.u32 [#allocation6], 4
      %s36 = int_to_ptr.vmem [resolvable:$true] %s35
      %41 = dma.hbm_to_vmem [thread:$0]  %s34, 256, %s36, [#allocation7], 128, 128, 8
    $region9: #{tpu_custom_call.1} parent=1 // pred_fallthru
      _
    // Predicated region
    $region10: #{tpu_custom_call.1} parent=1 // pred_check
      _
    $region11: #{tpu_custom_call.1} parent=1 // pred_check_branch
      %43 = sbr.rel (0) target = $region13
    $region12: #{tpu_custom_call.1} parent=1 // pred_region
      %44 = dma.done [#allocation4], 256
    $region13: #{tpu_custom_call.1} parent=1 // pred_fallthru
      _
    // Predicated region
    $region14: #{tpu_custom_call.1} parent=1 // pred_check
      _
    $region15: #{tpu_custom_call.1} parent=1 // pred_check_branch
      %46 = sbr.rel (0) target = $region17
    $region16: #{tpu_custom_call.1} parent=1 // pred_region
      %47 = dma.done [#allocation7], 256
    $region17: #{tpu_custom_call.1} parent=1 // pred_fallthru
      _
    %s48 = sadd.s32 0, 0
    %s49 = smul.u32 2, %s48
    %s50 = sadd.s32 0, 0
    %s51 = smul.u32 2, %s50
    %p52 = scmp.eq.s32.totalorder 0, 0
    // Predicated region
    $region18: #{tpu_custom_call.1} parent=1 // pred_check
      %p53 = pneg %p52
    $region19: #{tpu_custom_call.1} parent=1 // pred_check_branch
      %55 = sbr.rel (%p53) target = $region21
    $region20: #{tpu_custom_call.1} parent=1 // pred_region
      %56 = vst [vmem:[#allocation2] sm:$0xff] 0.0
    $region21: #{tpu_custom_call.1} parent=1 // pred_fallthru
      _
    %v57 = vld [vmem:[#allocation3] sm:$0xff]
    %v58 = vld [vmem:[#allocation3 + $0x8] sm:$0xff]
    %v59 = vld [vmem:[#allocation6] sm:$0xff]
    %v60 = vld [vmem:[#allocation6 + $0x8] sm:$0xff]
    %v61 = vsub.f32 %v57, %v59
    %v62 = vsub.f32 %v58, %v60
    %v63 = vand.u32 2147483647, %v61
    %v64 = vand.u32 2147483647, %v62
    %v65 = vld [vmem:[#allocation2] sm:$0xff]
    %v66 = vadd.f32 %v63, %v64
    %v67 = vadd.f32 %v65, %v66
    %68 = vst [vmem:[#allocation2] sm:$0xff] %v67
    // Predicated region
    $region22: #{tpu_custom_call.1} parent=1 // pred_check
      %p69 = pneg %p52
    $region23: #{tpu_custom_call.1} parent=1 // pred_check_branch
      %71 = sbr.rel (%p69) target = $region25
    $region24: #{tpu_custom_call.1} parent=1 // pred_region
      %v72 = vld [vmem:[#allocation2] sm:$0xff]
      %73 = vadd.xlane.f32.xlu0 %v72
      %v74 = vpop.xlane.xlu0 %73
      %v75 = vrot.slane %v74, 4
      %v76 = vadd.f32 %v74, %v75
      %v77 = vrot.slane %v76, 2
      %v78 = vadd.f32 %v76, %v77
      %v79 = vrot.slane %v78, 1
      %v80 = vadd.f32 %v78, %v79
      %s81 = vtos %v80
      %s82 = scalar_lea.smem [#allocation8], 0
      %83 = sst [smem:[%s82]] %s81
    $region25: #{tpu_custom_call.1} parent=1 // pred_fallthru
      _
    // Predicated region
    $region26: #{tpu_custom_call.1} parent=1 // pred_check
      _
    $region27: #{tpu_custom_call.1} parent=1 // pred_check_branch
      %85 = sbr.rel (0) target = $region29
    $region28: #{tpu_custom_call.1} parent=1 // pred_region
      %s87 = ssub.s32 16, 16
      %88 = vsyncadd [#allocation5], %s87
      %91 = dma.smem_to_hbm [#allocation8], 16, %s2, [#allocation5]
    $region29: #{tpu_custom_call.1} parent=1 // pred_fallthru
      _
    // Predicated region
    $region30: #{tpu_custom_call.1} parent=1 // pred_check
      _
    $region31: #{tpu_custom_call.1} parent=1 // pred_check_branch
      %93 = sbr.rel (0) target = $region33
    $region32: #{tpu_custom_call.1} parent=1 // pred_region
      %94 = dma.done [#allocation5], 16
    $region33: #{tpu_custom_call.1} parent=1 // pred_fallthru
      _
    %95 = sfence
    %96 = vsyncpa [#allocation4], 1
    %97 = vsyncpa [#allocation7], 1
    %98 = vsyncpa [#allocation5], 1

</llo_original>
